<compile_context>
chip_gen: v5e
topology: v5e:2x2
jax: 0.10.0
libtpu: 0.0.40
codegen_flags: <defaults>
</compile_context>

<pallas_src>
import functools

import jax
import jax.numpy as jnp
from jax.experimental import pallas as pl
from jax.experimental.pallas import tpu as pltpu


def _round_up(x, m):
    return ((x + m - 1) // m) * m


def _conv_bn_relu_kernel(patches_ref, w_ref, shift_ref, o_ref, acc_ref):
    # patches_ref: (tm, tk)   im2col rows for this tile of output pixels
    # w_ref:       (tk, tn)   conv weight with BN scale pre-folded in
    # shift_ref:   (1,  tn)   folded BN shift (beta - mean*scale)
    # o_ref:       (tm, tn)
    # acc_ref:     (tm, tn)   f32 VMEM accumulator, resident across K axis
    @pl.when(pl.program_id(2) == 0)
    def _init():
        # Start the accumulation from the BN shift -> finalize is ReLU only.
        acc_ref[...] = jnp.broadcast_to(shift_ref[...], acc_ref.shape)

    acc_ref[...] += jnp.dot(patches_ref[...], w_ref[...],
                            preferred_element_type=jnp.float32)

    @pl.when(pl.program_id(2) == pl.num_programs(2) - 1)
    def _finalize():
        o_ref[...] = jnp.maximum(acc_ref[...], 0.0).astype(o_ref.dtype)


def custom_conv_forward(x_nchw, weight_oikk, gamma, beta, running_mean,
                        running_var, *, stride=1, padding=0, eps=1e-5,
                        tile_m=512, tile_k=512, tile_n=512,
                        compute_dtype=None):
    """Conv2d(bias=False) + BatchNorm2d(eval) + ReLU, Pallas hot path."""
    n, c_in, h, w = x_nchw.shape
    c_out, _, kh, kw = weight_oikk.shape
    if compute_dtype is None:
        # Keep PyTorch-f32 numerics by default; pass jnp.bfloat16 for higher
        # MXU throughput / half the HBM+VMEM bytes if looser tolerance is OK.
        compute_dtype = x_nchw.dtype

    # ---- glue: NCHW -> NHWC, pad, im2col (static slicing) ----
    x = jnp.transpose(x_nchw, (0, 2, 3, 1))  # (N, H, W, C)
    if padding > 0:
        x = jnp.pad(x, ((0, 0), (padding, padding), (padding, padding), (0, 0)))
    hp, wp = h + 2 * padding, w + 2 * padding
    ho = (hp - kh) // stride + 1
    wo = (wp - kw) // stride + 1

    cols = []
    for i in range(kh):
        for j in range(kw):
            cols.append(x[:, i:i + stride * ho:stride,
                          j:j + stride * wo:stride, :])  # (N, Ho, Wo, C)
    patches = jnp.concatenate(cols, axis=-1)             # (N, Ho, Wo, KH*KW*C)
    m = n * ho * wo
    k = kh * kw * c_in
    patches = patches.reshape(m, k)

    # weight (O, C, KH, KW) -> (KH, KW, C, O) -> (K, O), matching patch order
    w_mat = jnp.transpose(weight_oikk, (2, 3, 1, 0)).reshape(k, c_out)

    # fold BN (eval): scale into the weight columns, shift becomes the bias
    inv_std = jax.lax.rsqrt(running_var.astype(jnp.float32) + eps)
    scale = gamma.astype(jnp.float32) * inv_std                        # (Cout,)
    shift = beta.astype(jnp.float32) - running_mean.astype(jnp.float32) * scale
    w_mat = w_mat.astype(jnp.float32) * scale[None, :]

    # ---- lane/sublane-aligned padded tiling ----
    # K (contraction) tiles
    kp0 = _round_up(k, 128)
    n_k = -(-kp0 // max(tile_k, 128))
    tk = _round_up(-(-kp0 // n_k), 128)
    kp = tk * n_k
    # Cout (lane) tiles
    cop0 = _round_up(c_out, 128)
    n_n = -(-cop0 // max(tile_n, 128))
    tn = _round_up(-(-cop0 // n_n), 128)
    cop = tn * n_n
    # M (sublane) tile
    tm = min(tile_m, _round_up(m, 8))
    tm = max(8, _round_up(tm, 8))

    # Keep per-step VMEM (double-buffered inputs/outputs + f32 accumulator)
    # comfortably under the default scoped VMEM limit on all generations.
    eb = jnp.dtype(compute_dtype).itemsize
    ob = jnp.dtype(x_nchw.dtype).itemsize

    def _vmem_bytes(tm_):
        return (2 * tm_ * tk * eb          # patches (double-buffered)
                + 2 * tk * tn * eb         # weights (double-buffered)
                + 2 * tm_ * tn * ob        # output  (double-buffered)
                + tm_ * tn * 4             # f32 accumulator scratch
                + 2 * tn * 4)              # shift   (double-buffered)

    while _vmem_bytes(tm) > 12 * 1024 * 1024 and tm > 64:
        tm = max(8, _round_up(tm // 2, 8))
    m_pad = _round_up(m, tm)

    patches = jnp.pad(patches, ((0, m_pad - m), (0, kp - k))).astype(compute_dtype)
    w_pad = jnp.pad(w_mat, ((0, kp - k), (0, cop - c_out))).astype(compute_dtype)
    shift_pad = jnp.pad(shift, (0, cop - c_out)).reshape(1, cop).astype(jnp.float32)

    flops = 2 * m * k * c_out
    bytes_accessed = (m_pad * kp * eb
                      + (m_pad // tm) * kp * cop * eb     # weights re-streamed per M tile
                      + m_pad * cop * ob)

    out = pl.pallas_call(
        _conv_bn_relu_kernel,
        out_shape=jax.ShapeDtypeStruct((m_pad, cop), x_nchw.dtype),
        grid_spec=pltpu.PrefetchScalarGridSpec(
            num_scalar_prefetch=0,
            grid=(m_pad // tm, cop // tn, kp // tk),
            in_specs=[
                pl.BlockSpec((tm, tk), lambda i, j, kk: (i, kk)),
                pl.BlockSpec((tk, tn), lambda i, j, kk: (kk, j)),
                pl.BlockSpec((1, tn), lambda i, j, kk: (0, j)),
            ],
            out_specs=pl.BlockSpec((tm, tn), lambda i, j, kk: (i, j)),
            scratch_shapes=[pltpu.VMEM((tm, tn), jnp.float32)],
        ),
        compiler_params=pltpu.CompilerParams(
            dimension_semantics=("parallel", "parallel", "arbitrary")),
        cost_estimate=pl.CostEstimate(flops=int(flops), transcendentals=0,
                                      bytes_accessed=int(bytes_accessed)),
    )(patches, w_pad, shift_pad)

    out = out[:m, :c_out].reshape(n, ho, wo, c_out)   # NHWC, drop padding
    return jnp.transpose(out, (0, 3, 1, 2))           # back to NCHW


def reference_forward(x_nchw, weight_oikk, gamma, beta, running_mean,
                      running_var, *, stride=1, padding=0, eps=1e-5):
    conv = jax.lax.conv_general_dilated(
        x_nchw.astype(jnp.float32), weight_oikk.astype(jnp.float32),
        window_strides=(stride, stride),
        padding=[(padding, padding), (padding, padding)],
        dimension_numbers=("NCHW", "OIHW", "NCHW"))
    scale = (gamma / jnp.sqrt(running_var + eps)).reshape(1, -1, 1, 1)
    shift = (beta - running_mean * gamma /
             jnp.sqrt(running_var + eps)).reshape(1, -1, 1, 1)
    return jnp.maximum(conv * scale + shift, 0.0)


if __name__ == "__main__":
    key = jax.random.PRNGKey(0)
    k_x, k_w = jax.random.split(key)

    # Small shapes consistent with Custom_Conv (kernel=3).
    N, C_IN, H, W = 2, 4, 16, 16
    C_OUT, KH, KW = 8, 3, 3

    x = jax.random.normal(k_x, (N, C_IN, H, W), dtype=jnp.float32)
    weight = jax.random.normal(k_w, (C_OUT, C_IN, KH, KW),
                               dtype=jnp.float32) * 0.1

    # Deterministic BatchNorm parameters / running stats
    gamma = jnp.linspace(0.8, 1.2, C_OUT, dtype=jnp.float32)
    beta = jnp.linspace(-0.1, 0.1, C_OUT, dtype=jnp.float32)
    running_mean = jnp.linspace(-0.05, 0.05, C_OUT, dtype=jnp.float32)
    running_var = jnp.linspace(0.9, 1.1, C_OUT, dtype=jnp.float32)

    # Config 1: module defaults (kernel=3, stride=1, padding=0)
    fwd1 = jax.jit(functools.partial(custom_conv_forward, stride=1, padding=0))
    out1 = jax.block_until_ready(fwd1(x, weight, gamma, beta,
                                      running_mean, running_var))
    ref1 = reference_forward(x, weight, gamma, beta, running_mean, running_var,
                             stride=1, padding=0)
    assert out1.shape == (N, C_OUT, H - KH + 1, W - KW + 1), out1.shape
    assert jnp.allclose(out1, ref1, atol=1e-4, rtol=1e-4), "mismatch (s=1,p=0)"

    # Config 2: strided/padded variant (as used in the ContextNet stem)
    fwd2 = jax.jit(functools.partial(custom_conv_forward, stride=2, padding=1))
    out2 = jax.block_until_ready(fwd2(x, weight, gamma, beta,
                                      running_mean, running_var))
    ref2 = reference_forward(x, weight, gamma, beta, running_mean, running_var,
                             stride=2, padding=1)
    assert out2.shape == ref2.shape, (out2.shape, ref2.shape)
    assert jnp.allclose(out2, ref2, atol=1e-4, rtol=1e-4), "mismatch (s=2,p=1)"

    print("KERNEL_OK")
</pallas_src>

<mosaic_0001>
module attributes {stable_mosaic.version = 11 : i64} {
  func.func @_conv_bn_relu_kernel(%arg0: i32, %arg1: i32, %arg2: i32, %arg3: memref<392x128xf32, #tpu.memory_space<vmem>>, %arg4: memref<128x128xf32, #tpu.memory_space<vmem>>, %arg5: memref<1x128xf32, #tpu.memory_space<vmem>>, %arg6: memref<392x128xf32, #tpu.memory_space<vmem>>, %arg7: memref<392x128xf32, #tpu.memory_space<vmem>>) attributes {dimension_semantics = [#tpu.dimension_semantics<parallel>, #tpu.dimension_semantics<parallel>, #tpu.dimension_semantics<arbitrary>], iteration_bounds = array<i64: 1, 1, 1>, scalar_prefetch = 0 : i64, scratch_operands = 1 : i64, tpu.core_type = #tpu.core_type<tc>, window_params = [{transform_indices = @transform_0, window_bounds = array<i64: 392, 128>}, {transform_indices = @transform_1, window_bounds = array<i64: 128, 128>}, {transform_indices = @transform_2, window_bounds = array<i64: 1, 128>}, {transform_indices = @transform_3, window_bounds = array<i64: 392, 128>}]} {
    %c0_i32 = arith.constant 0 : i32
    %0 = arith.cmpi eq, %arg2, %c0_i32 : i32
    %1 = arith.extui %0 : i1 to i32
    %c0_i32_0 = arith.constant 0 : i32
    %2 = arith.cmpi ne, %1, %c0_i32_0 : i32
    scf.if %2 {
      %c0_10 = arith.constant 0 : index
      %c0_11 = arith.constant 0 : index
      %12 = vector.load %arg5[%c0_10, %c0_11] : memref<1x128xf32, #tpu.memory_space<vmem>>, vector<1x128xf32>
      %13 = vector.shape_cast %12 : vector<1x128xf32> to vector<1x128xf32>
      %14 = vector.broadcast %13 : vector<1x128xf32> to vector<392x128xf32>
      %c0_12 = arith.constant 0 : index
      %c0_13 = arith.constant 0 : index
      %15 = vector.load %arg7[%c0_12, %c0_13] : memref<392x128xf32, #tpu.memory_space<vmem>>, vector<392x128xf32>
      tpu.vector_store %arg7[%c0_12, %c0_13], %14 {strides = array<i32>} : memref<392x128xf32, #tpu.memory_space<vmem>>, vector<392x128xf32>,
    } else {
    }
    %c0 = arith.constant 0 : index
    %c0_1 = arith.constant 0 : index
    %3 = vector.load %arg7[%c0, %c0_1] : memref<392x128xf32, #tpu.memory_space<vmem>>, vector<392x128xf32>
    %c0_2 = arith.constant 0 : index
    %c0_3 = arith.constant 0 : index
    %4 = vector.load %arg3[%c0_2, %c0_3] : memref<392x128xf32, #tpu.memory_space<vmem>>, vector<392x128xf32>
    %c0_4 = arith.constant 0 : index
    %c0_5 = arith.constant 0 : index
    %5 = vector.load %arg4[%c0_4, %c0_5] : memref<128x128xf32, #tpu.memory_space<vmem>>, vector<128x128xf32>
    %cst = arith.constant dense<0.000000e+00> : vector<392x128xf32>
    %6 = tpu.matmul %4, %5, %cst {dimension_numbers = #tpu.dot_dimension_numbers<[1], [0], [0], [1], [0, 0, 1, 1], [], []>} : vector<392x128xf32>, vector<128x128xf32>, vector<392x128xf32> -> vector<392x128xf32>
    %7 = arith.addf %3, %6 : vector<392x128xf32>
    %c0_6 = arith.constant 0 : index
    %c0_7 = arith.constant 0 : index
    %8 = vector.load %arg7[%c0_6, %c0_7] : memref<392x128xf32, #tpu.memory_space<vmem>>, vector<392x128xf32>
    tpu.vector_store %arg7[%c0_6, %c0_7], %7 {strides = array<i32>} : memref<392x128xf32, #tpu.memory_space<vmem>>, vector<392x128xf32>,
    %c0_i32_8 = arith.constant 0 : i32
    %9 = arith.cmpi eq, %arg2, %c0_i32_8 : i32
    %10 = arith.extui %9 : i1 to i32
    %c0_i32_9 = arith.constant 0 : i32
    %11 = arith.cmpi ne, %10, %c0_i32_9 : i32
    scf.if %11 {
      %c0_10 = arith.constant 0 : index
      %c0_11 = arith.constant 0 : index
      %12 = vector.load %arg7[%c0_10, %c0_11] : memref<392x128xf32, #tpu.memory_space<vmem>>, vector<392x128xf32>
      %cst_12 = arith.constant 0.000000e+00 : f32
      %13 = vector.broadcast %cst_12 : f32 to vector<392x128xf32>
      %14 = arith.maximumf %12, %13 : vector<392x128xf32>
      %c0_13 = arith.constant 0 : index
      %c0_14 = arith.constant 0 : index
      %15 = vector.load %arg6[%c0_13, %c0_14] : memref<392x128xf32, #tpu.memory_space<vmem>>, vector<392x128xf32>
      tpu.vector_store %arg6[%c0_13, %c0_14], %14 {strides = array<i32>} : memref<392x128xf32, #tpu.memory_space<vmem>>, vector<392x128xf32>,
    } else {
    }
    return
  }
  func.func @transform_0(%arg0: i32, %arg1: i32, %arg2: i32) -> (i32, i32) {
    %c0_i32 = arith.constant 0 : i32
    return %arg0, %arg2 : i32, i32
  }
  func.func @transform_1(%arg0: i32, %arg1: i32, %arg2: i32) -> (i32, i32) {
    %c0_i32 = arith.constant 0 : i32
    return %arg2, %arg1 : i32, i32
  }
  func.func @transform_2(%arg0: i32, %arg1: i32, %arg2: i32) -> (i32, i32) {
    %c0_i32 = arith.constant 0 : i32
    %c0_i32_0 = arith.constant 0 : i32
    return %c0_i32, %arg1 : i32, i32
  }
  func.func @transform_3(%arg0: i32, %arg1: i32, %arg2: i32) -> (i32, i32) {
    %c0_i32 = arith.constant 0 : i32
    return %arg0, %arg1 : i32, i32
  }
}

</mosaic_0001>

<llo_original>
// kernel: custom_conv_forward.1
$region0: #{custom_conv_forward.1}
  #allocation0 [shape = 'u32[]', space=smem, size = 0x4, offset = 0x4, fixed_abs, tag = 'smem constant byte address 0x4 - core index']
  #allocation1 [shape = 'u32[72,128]{1,0:T(1,128)}', space=vmem, size = 0x9000, scoped, tag = 'internal scratch']
  #allocation2 [shape = 'f32[392,128]{1,0:T(8,128)}', space=vmem, size = 0x31000, scoped, tag = 'scratch operand']
  %s0 = inlined_call_operand.vmem [shape: f32[392,128], index: 0, kind: input, shape index: {}]
  %s1 = inlined_call_operand.vmem [shape: f32[128,128], index: 1, kind: input, shape index: {}]
  %s2 = inlined_call_operand.vmem [shape: f32[1,128], index: 2, kind: input, shape index: {}]
  %s3 = inlined_call_operand.vmem [shape: f32[392,128], index: 3, kind: output, shape index: {}]
  %s4 = sld [smem:[#allocation0]]
  $region30: #{custom_conv_forward.1} parent=0
    _
  %s6 = ssub.s32 1, %s4
  %s7 = scalar_select 0, %s6, %s4
  // Predicated region
  $region2: #{custom_conv_forward.1} parent=0 // pred_check
    _
  $region3: #{custom_conv_forward.1} parent=0 // pred_check_branch
    %9 = sbr.rel (0) target = $region5
  $region4: #{custom_conv_forward.1} parent=0 // pred_region
    _
  $region5: #{custom_conv_forward.1} parent=0 // pred_fallthru
    _
  // Predicated region
  $region6: #{custom_conv_forward.1} parent=0 // pred_check
    _
  $region7: #{custom_conv_forward.1} parent=0 // pred_check_branch
    %11 = sbr.rel (0) target = $region9
  $region8: #{custom_conv_forward.1} parent=0 // pred_region
    _
  $region9: #{custom_conv_forward.1} parent=0 // pred_fallthru
    _
  // Predicated region
  $region10: #{custom_conv_forward.1} parent=0 // pred_check
    _
  $region11: #{custom_conv_forward.1} parent=0 // pred_check_branch
    %13 = sbr.rel (0) target = $region13
  $region12: #{custom_conv_forward.1} parent=0 // pred_region
    _
  $region13: #{custom_conv_forward.1} parent=0 // pred_fallthru
    _
  %p14 = scmp.eq.s32.totalorder 0, 0
  // Predicated region
  $region14: #{custom_conv_forward.1} parent=0 // pred_check
    %p15 = pneg %p14
  $region15: #{custom_conv_forward.1} parent=0 // pred_check_branch
    %17 = sbr.rel (%p15) target = $region17
  $region16: #{custom_conv_forward.1} parent=0 // pred_region
    %v18 = vld [vmem:[%s2] sm:$0x1]
    %v20 = vperm.slane %v18, 0
    %22 = vst [vmem:[#allocation2] sm:$0xff] %v20
    %23 = vst [vmem:[#allocation2 + $0x8] sm:$0xff] %v20
    %24 = vst [vmem:[#allocation2 + $0x10] sm:$0xff] %v20
    %25 = vst [vmem:[#allocation2 + $0x18] sm:$0xff] %v20
    %26 = vst [vmem:[#allocation2 + $0x20] sm:$0xff] %v20
    %27 = vst [vmem:[#allocation2 + $0x28] sm:$0xff] %v20
    %28 = vst [vmem:[#allocation2 + $0x30] sm:$0xff] %v20
    %29 = vst [vmem:[#allocation2 + $0x38] sm:$0xff] %v20
    %30 = vst [vmem:[#allocation2 + $0x40] sm:$0xff] %v20
    %31 = vst [vmem:[#allocation2 + $0x48] sm:$0xff] %v20
    %32 = vst [vmem:[#allocation2 + $0x50] sm:$0xff] %v20
    %33 = vst [vmem:[#allocation2 + $0x58] sm:$0xff] %v20
    %34 = vst [vmem:[#allocation2 + $0x60] sm:$0xff] %v20
    %35 = vst [vmem:[#allocation2 + $0x68] sm:$0xff] %v20
    %36 = vst [vmem:[#allocation2 + $0x70] sm:$0xff] %v20
    %37 = vst [vmem:[#allocation2 + $0x78] sm:$0xff] %v20
    %38 = vst [vmem:[#allocation2 + $0x80] sm:$0xff] %v20
    %39 = vst [vmem:[#allocation2 + $0x88] sm:$0xff] %v20
    %40 = vst [vmem:[#allocation2 + $0x90] sm:$0xff] %v20
    %41 = vst [vmem:[#allocation2 + $0x98] sm:$0xff] %v20
    %42 = vst [vmem:[#allocation2 + $0xa0] sm:$0xff] %v20
    %43 = vst [vmem:[#allocation2 + $0xa8] sm:$0xff] %v20
    %44 = vst [vmem:[#allocation2 + $0xb0] sm:$0xff] %v20
    %45 = vst [vmem:[#allocation2 + $0xb8] sm:$0xff] %v20
    %46 = vst [vmem:[#allocation2 + $0xc0] sm:$0xff] %v20
    %47 = vst [vmem:[#allocation2 + $0xc8] sm:$0xff] %v20
    %48 = vst [vmem:[#allocation2 + $0xd0] sm:$0xff] %v20
    %49 = vst [vmem:[#allocation2 + $0xd8] sm:$0xff] %v20
    %50 = vst [vmem:[#allocation2 + $0xe0] sm:$0xff] %v20
    %51 = vst [vmem:[#allocation2 + $0xe8] sm:$0xff] %v20
    %52 = vst [vmem:[#allocation2 + $0xf0] sm:$0xff] %v20
    %53 = vst [vmem:[#allocation2 + $0xf8] sm:$0xff] %v20
    %54 = vst [vmem:[#allocation2 + $0x100] sm:$0xff] %v20
    %55 = vst [vmem:[#allocation2 + $0x108] sm:$0xff] %v20
    %56 = vst [vmem:[#allocation2 + $0x110] sm:$0xff] %v20
    %57 = vst [vmem:[#allocation2 + $0x118] sm:$0xff] %v20
    %58 = vst [vmem:[#allocation2 + $0x120] sm:$0xff] %v20
    %59 = vst [vmem:[#allocation2 + $0x128] sm:$0xff] %v20
    %60 = vst [vmem:[#allocation2 + $0x130] sm:$0xff] %v20
    %61 = vst [vmem:[#allocation2 + $0x138] sm:$0xff] %v20
    %62 = vst [vmem:[#allocation2 + $0x140] sm:$0xff] %v20
    %63 = vst [vmem:[#allocation2 + $0x148] sm:$0xff] %v20
    %64 = vst [vmem:[#allocation2 + $0x150] sm:$0xff] %v20
    %65 = vst [vmem:[#allocation2 + $0x158] sm:$0xff] %v20
    %66 = vst [vmem:[#allocation2 + $0x160] sm:$0xff] %v20
    %67 = vst [vmem:[#allocation2 + $0x168] sm:$0xff] %v20
    %68 = vst [vmem:[#allocation2 + $0x170] sm:$0xff] %v20
    %69 = vst [vmem:[#allocation2 + $0x178] sm:$0xff] %v20
    %70 = vst [vmem:[#allocation2 + $0x180] sm:$0xff] %v20
  $region17: #{custom_conv_forward.1} parent=0 // pred_fallthru
    _
  %v71 = vld [vmem:[#allocation2] sm:$0xff]
  %v72 = vld [vmem:[#allocation2 + $0x8] sm:$0xff]
  %v73 = vld [vmem:[#allocation2 + $0x10] sm:$0xff]
  %v74 = vld [vmem:[#allocation2 + $0x18] sm:$0xff]
  %v75 = vld [vmem:[#allocation2 + $0x20] sm:$0xff]
  %v76 = vld [vmem:[#allocation2 + $0x28] sm:$0xff]
  %v77 = vld [vmem:[#allocation2 + $0x30] sm:$0xff]
  %v78 = vld [vmem:[#allocation2 + $0x38] sm:$0xff]
  %v79 = vld [vmem:[#allocation2 + $0x40] sm:$0xff]
  %v80 = vld [vmem:[#allocation2 + $0x48] sm:$0xff]
  %v81 = vld [vmem:[#allocation2 + $0x50] sm:$0xff]
  %v82 = vld [vmem:[#allocation2 + $0x58] sm:$0xff]
  %v83 = vld [vmem:[#allocation2 + $0x60] sm:$0xff]
  %v84 = vld [vmem:[#allocation2 + $0x68] sm:$0xff]
  %v85 = vld [vmem:[#allocation2 + $0x70] sm:$0xff]
  %v86 = vld [vmem:[#allocation2 + $0x78] sm:$0xff]
  %v87 = vld [vmem:[#allocation2 + $0x80] sm:$0xff]
  %v88 = vld [vmem:[#allocation2 + $0x88] sm:$0xff]
  %v89 = vld [vmem:[#allocation2 + $0x90] sm:$0xff]
  %v90 = vld [vmem:[#allocation2 + $0x98] sm:$0xff]
  %v91 = vld [vmem:[#allocation2 + $0xa0] sm:$0xff]
  %v92 = vld [vmem:[#allocation2 + $0xa8] sm:$0xff]
  %v93 = vld [vmem:[#allocation2 + $0xb0] sm:$0xff]
  %v94 = vld [vmem:[#allocation2 + $0xb8] sm:$0xff]
  %v95 = vld [vmem:[#allocation2 + $0xc0] sm:$0xff]
  %v96 = vld [vmem:[#allocation2 + $0xc8] sm:$0xff]
  %v97 = vld [vmem:[#allocation2 + $0xd0] sm:$0xff]
  %v98 = vld [vmem:[#allocation2 + $0xd8] sm:$0xff]
  %v99 = vld [vmem:[#allocation2 + $0xe0] sm:$0xff]
  %v100 = vld [vmem:[#allocation2 + $0xe8] sm:$0xff]
  %v101 = vld [vmem:[#allocation2 + $0xf0] sm:$0xff]
  %v102 = vld [vmem:[#allocation2 + $0xf8] sm:$0xff]
  %v103 = vld [vmem:[#allocation2 + $0x100] sm:$0xff]
  %v104 = vld [vmem:[#allocation2 + $0x108] sm:$0xff]
  %v105 = vld [vmem:[#allocation2 + $0x110] sm:$0xff]
  %v106 = vld [vmem:[#allocation2 + $0x118] sm:$0xff]
  %v107 = vld [vmem:[#allocation2 + $0x120] sm:$0xff]
  %v108 = vld [vmem:[#allocation2 + $0x128] sm:$0xff]
  %v109 = vld [vmem:[#allocation2 + $0x130] sm:$0xff]
  %v110 = vld [vmem:[#allocation2 + $0x138] sm:$0xff]
  %v111 = vld [vmem:[#allocation2 + $0x140] sm:$0xff]
  %v112 = vld [vmem:[#allocation2 + $0x148] sm:$0xff]
  %v113 = vld [vmem:[#allocation2 + $0x150] sm:$0xff]
  %v114 = vld [vmem:[#allocation2 + $0x158] sm:$0xff]
  %v115 = vld [vmem:[#allocation2 + $0x160] sm:$0xff]
  %v116 = vld [vmem:[#allocation2 + $0x168] sm:$0xff]
  %v117 = vld [vmem:[#allocation2 + $0x170] sm:$0xff]
  %v118 = vld [vmem:[#allocation2 + $0x178] sm:$0xff]
  %v119 = vld [vmem:[#allocation2 + $0x180] sm:$0xff]
  %v120 = vld [vmem:[%s0] sm:$0xff]
  %v121 = vld [vmem:[%s0 + $0x8] sm:$0xff]
  %v122 = vld [vmem:[%s0 + $0x10] sm:$0xff]
  %v123 = vld [vmem:[%s0 + $0x18] sm:$0xff]
  %v124 = vld [vmem:[%s0 + $0x20] sm:$0xff]
  %v125 = vld [vmem:[%s0 + $0x28] sm:$0xff]
  %v126 = vld [vmem:[%s0 + $0x30] sm:$0xff]
  %v127 = vld [vmem:[%s0 + $0x38] sm:$0xff]
  %v128 = vld [vmem:[%s0 + $0x40] sm:$0xff]
  %v129 = vld [vmem:[%s0 + $0x48] sm:$0xff]
  %v130 = vld [vmem:[%s0 + $0x50] sm:$0xff]
  %v131 = vld [vmem:[%s0 + $0x58] sm:$0xff]
  %v132 = vld [vmem:[%s0 + $0x60] sm:$0xff]
  %v133 = vld [vmem:[%s0 + $0x68] sm:$0xff]
  %v134 = vld [vmem:[%s0 + $0x70] sm:$0xff]
  %v135 = vld [vmem:[%s0 + $0x78] sm:$0xff]
  %v136 = vld [vmem:[%s0 + $0x80] sm:$0xff]
  %v137 = vld [vmem:[%s0 + $0x88] sm:$0xff]
  %v138 = vld [vmem:[%s0 + $0x90] sm:$0xff]
  %v139 = vld [vmem:[%s0 + $0x98] sm:$0xff]
  %v140 = vld [vmem:[%s0 + $0xa0] sm:$0xff]
  %v141 = vld [vmem:[%s0 + $0xa8] sm:$0xff]
  %v142 = vld [vmem:[%s0 + $0xb0] sm:$0xff]
  %v143 = vld [vmem:[%s0 + $0xb8] sm:$0xff]
  %v144 = vld [vmem:[%s0 + $0xc0] sm:$0xff]
  %v145 = vld [vmem:[%s0 + $0xc8] sm:$0xff]
  %v146 = vld [vmem:[%s0 + $0xd0] sm:$0xff]
  %v147 = vld [vmem:[%s0 + $0xd8] sm:$0xff]
  %v148 = vld [vmem:[%s0 + $0xe0] sm:$0xff]
  %v149 = vld [vmem:[%s0 + $0xe8] sm:$0xff]
  %v150 = vld [vmem:[%s0 + $0xf0] sm:$0xff]
  %v151 = vld [vmem:[%s0 + $0xf8] sm:$0xff]
  %v152 = vld [vmem:[%s0 + $0x100] sm:$0xff]
  %v153 = vld [vmem:[%s0 + $0x108] sm:$0xff]
  %v154 = vld [vmem:[%s0 + $0x110] sm:$0xff]
  %v155 = vld [vmem:[%s0 + $0x118] sm:$0xff]
  %v156 = vld [vmem:[%s0 + $0x120] sm:$0xff]
  %v157 = vld [vmem:[%s0 + $0x128] sm:$0xff]
  %v158 = vld [vmem:[%s0 + $0x130] sm:$0xff]
  %v159 = vld [vmem:[%s0 + $0x138] sm:$0xff]
  %v160 = vld [vmem:[%s0 + $0x140] sm:$0xff]
  %v161 = vld [vmem:[%s0 + $0x148] sm:$0xff]
  %v162 = vld [vmem:[%s0 + $0x150] sm:$0xff]
  %v163 = vld [vmem:[%s0 + $0x158] sm:$0xff]
  %v164 = vld [vmem:[%s0 + $0x160] sm:$0xff]
  %v165 = vld [vmem:[%s0 + $0x168] sm:$0xff]
  %v166 = vld [vmem:[%s0 + $0x170] sm:$0xff]
  %v167 = vld [vmem:[%s0 + $0x178] sm:$0xff]
  %v168 = vld [vmem:[%s0 + $0x180] sm:$0xff]
  %v169 = vld [vmem:[%s1] sm:$0xff]
  %v170 = vld [vmem:[%s1 + $0x8] sm:$0xff]
  %v171 = vld [vmem:[%s1 + $0x10] sm:$0xff]
  %v172 = vld [vmem:[%s1 + $0x18] sm:$0xff]
  %v173 = vld [vmem:[%s1 + $0x20] sm:$0xff]
  %v174 = vld [vmem:[%s1 + $0x28] sm:$0xff]
  %v175 = vld [vmem:[%s1 + $0x30] sm:$0xff]
  %v176 = vld [vmem:[%s1 + $0x38] sm:$0xff]
  %v177 = vld [vmem:[%s1 + $0x40] sm:$0xff]
  %v178 = vld [vmem:[%s1 + $0x48] sm:$0xff]
  %v179 = vld [vmem:[%s1 + $0x50] sm:$0xff]
  %v180 = vld [vmem:[%s1 + $0x58] sm:$0xff]
  %v181 = vld [vmem:[%s1 + $0x60] sm:$0xff]
  %v182 = vld [vmem:[%s1 + $0x68] sm:$0xff]
  %v183 = vld [vmem:[%s1 + $0x70] sm:$0xff]
  %v184 = vld [vmem:[%s1 + $0x78] sm:$0xff]
  %185 = vmatpush.msra.mxu0 %v184
  %186 = vmatpush.msra.mxu0 %v183
  %187 = vmatpush.msra.mxu0 %v182
  %188 = vmatpush.msra.mxu0 %v181
  %189 = vmatpush.msra.mxu0 %v180
  %190 = vmatpush.msra.mxu0 %v179
  %191 = vmatpush.msra.mxu0 %v178
  %192 = vmatpush.msra.mxu0 %v177
  %193 = vmatpush.msra.mxu0 %v176
  %194 = vmatpush.msra.mxu0 %v175
  %195 = vmatpush.msra.mxu0 %v174
  %196 = vmatpush.msra.mxu0 %v173
  %197 = vmatpush.msra.mxu0 %v172
  %198 = vmatpush.msra.mxu0 %v171
  %199 = vmatpush.msra.mxu0 %v170
  %200 = vmatpush.msra.mxu0 %v169
  %201 = vmatmul.f32.gmra.mxu0 %v120
  %v202 = vpop.f32.mrf.mxu0
  %v203 = vadd.f32 0.0, %v202
  %204 = vmatmul.f32.gmra.mxu0 %v121
  %v205 = vpop.f32.mrf.mxu0
  %v206 = vadd.f32 0.0, %v205
  %207 = vmatmul.f32.gmra.mxu0 %v122
  %v208 = vpop.f32.mrf.mxu0
  %v209 = vadd.f32 0.0, %v208
  %210 = vmatmul.f32.gmra.mxu0 %v123
  %v211 = vpop.f32.mrf.mxu0
  %v212 = vadd.f32 0.0, %v211
  %213 = vmatmul.f32.gmra.mxu0 %v124
  %v214 = vpop.f32.mrf.mxu0
  %v215 = vadd.f32 0.0, %v214
  %216 = vmatmul.f32.gmra.mxu0 %v125
  %v217 = vpop.f32.mrf.mxu0
  %v218 = vadd.f32 0.0, %v217
  %219 = vmatmul.f32.gmra.mxu0 %v126
  %v220 = vpop.f32.mrf.mxu0
  %v221 = vadd.f32 0.0, %v220
  %222 = vmatmul.f32.gmra.mxu0 %v127
  %v223 = vpop.f32.mrf.mxu0
  %v224 = vadd.f32 0.0, %v223
  %225 = vmatmul.f32.gmra.mxu0 %v128
  %v226 = vpop.f32.mrf.mxu0
  %v227 = vadd.f32 0.0, %v226
  %228 = vmatmul.f32.gmra.mxu0 %v129
  %v229 = vpop.f32.mrf.mxu0
  %v230 = vadd.f32 0.0, %v229
  %231 = vmatmul.f32.gmra.mxu0 %v130
  %v232 = vpop.f32.mrf.mxu0
  %v233 = vadd.f32 0.0, %v232
  %234 = vmatmul.f32.gmra.mxu0 %v131
  %v235 = vpop.f32.mrf.mxu0
  %v236 = vadd.f32 0.0, %v235
  %237 = vmatmul.f32.gmra.mxu0 %v132
  %v238 = vpop.f32.mrf.mxu0
  %v239 = vadd.f32 0.0, %v238
  %240 = vmatmul.f32.gmra.mxu0 %v133
  %v241 = vpop.f32.mrf.mxu0
  %v242 = vadd.f32 0.0, %v241
  %243 = vmatmul.f32.gmra.mxu0 %v134
  %v244 = vpop.f32.mrf.mxu0
  %v245 = vadd.f32 0.0, %v244
  %246 = vmatmul.f32.gmra.mxu0 %v135
  %v247 = vpop.f32.mrf.mxu0
  %v248 = vadd.f32 0.0, %v247
  %249 = vmatmul.f32.gmra.mxu0 %v136
  %v250 = vpop.f32.mrf.mxu0
  %v251 = vadd.f32 0.0, %v250
  %252 = vmatmul.f32.gmra.mxu0 %v137
  %v253 = vpop.f32.mrf.mxu0
  %v254 = vadd.f32 0.0, %v253
  %255 = vmatmul.f32.gmra.mxu0 %v138
  %v256 = vpop.f32.mrf.mxu0
  %v257 = vadd.f32 0.0, %v256
  %258 = vmatmul.f32.gmra.mxu0 %v139
  %v259 = vpop.f32.mrf.mxu0
  %v260 = vadd.f32 0.0, %v259
  %261 = vmatmul.f32.gmra.mxu0 %v140
  %v262 = vpop.f32.mrf.mxu0
  %v263 = vadd.f32 0.0, %v262
  %264 = vmatmul.f32.gmra.mxu0 %v141
  %v265 = vpop.f32.mrf.mxu0
  %v266 = vadd.f32 0.0, %v265
  %267 = vmatmul.f32.gmra.mxu0 %v142
  %v268 = vpop.f32.mrf.mxu0
  %v269 = vadd.f32 0.0, %v268
  %270 = vmatmul.f32.gmra.mxu0 %v143
  %v271 = vpop.f32.mrf.mxu0
  %v272 = vadd.f32 0.0, %v271
  %273 = vmatmul.f32.gmra.mxu0 %v144
  %v274 = vpop.f32.mrf.mxu0
  %v275 = vadd.f32 0.0, %v274
  %276 = vmatmul.f32.gmra.mxu0 %v145
  %v277 = vpop.f32.mrf.mxu0
  %v278 = vadd.f32 0.0, %v277
  %279 = vmatmul.f32.gmra.mxu0 %v146
  %v280 = vpop.f32.mrf.mxu0
  %v281 = vadd.f32 0.0, %v280
  %282 = vmatmul.f32.gmra.mxu0 %v147
  %v283 = vpop.f32.mrf.mxu0
  %v284 = vadd.f32 0.0, %v283
  %285 = vmatmul.f32.gmra.mxu0 %v148
  %v286 = vpop.f32.mrf.mxu0
  %v287 = vadd.f32 0.0, %v286
  %288 = vmatmul.f32.gmra.mxu0 %v149
  %v289 = vpop.f32.mrf.mxu0
  %v290 = vadd.f32 0.0, %v289
  %291 = vmatmul.f32.gmra.mxu0 %v150
  %v292 = vpop.f32.mrf.mxu0
  %v293 = vadd.f32 0.0, %v292
  %294 = vmatmul.f32.gmra.mxu0 %v151
  %v295 = vpop.f32.mrf.mxu0
  %v296 = vadd.f32 0.0, %v295
  %297 = vmatmul.f32.gmra.mxu0 %v152
  %v298 = vpop.f32.mrf.mxu0
  %v299 = vadd.f32 0.0, %v298
  %300 = vmatmul.f32.gmra.mxu0 %v153
  %v301 = vpop.f32.mrf.mxu0
  %v302 = vadd.f32 0.0, %v301
  %303 = vmatmul.f32.gmra.mxu0 %v154
  %v304 = vpop.f32.mrf.mxu0
  %v305 = vadd.f32 0.0, %v304
  %306 = vmatmul.f32.gmra.mxu0 %v155
  %v307 = vpop.f32.mrf.mxu0
  %v308 = vadd.f32 0.0, %v307
  %309 = vmatmul.f32.gmra.mxu0 %v156
  %v310 = vpop.f32.mrf.mxu0
  %v311 = vadd.f32 0.0, %v310
  %312 = vmatmul.f32.gmra.mxu0 %v157
  %v313 = vpop.f32.mrf.mxu0
  %v314 = vadd.f32 0.0, %v313
  %315 = vmatmul.f32.gmra.mxu0 %v158
  %v316 = vpop.f32.mrf.mxu0
  %v317 = vadd.f32 0.0, %v316
  %318 = vmatmul.f32.gmra.mxu0 %v159
  %v319 = vpop.f32.mrf.mxu0
  %v320 = vadd.f32 0.0, %v319
  %321 = vmatmul.f32.gmra.mxu0 %v160
  %v322 = vpop.f32.mrf.mxu0
  %v323 = vadd.f32 0.0, %v322
  %324 = vmatmul.f32.gmra.mxu0 %v161
  %v325 = vpop.f32.mrf.mxu0
  %v326 = vadd.f32 0.0, %v325
  %327 = vmatmul.f32.gmra.mxu0 %v162
  %v328 = vpop.f32.mrf.mxu0
  %v329 = vadd.f32 0.0, %v328
  %330 = vmatmul.f32.gmra.mxu0 %v163
  %v331 = vpop.f32.mrf.mxu0
  %v332 = vadd.f32 0.0, %v331
  %333 = vmatmul.f32.gmra.mxu0 %v164
  %v334 = vpop.f32.mrf.mxu0
  %v335 = vadd.f32 0.0, %v334
  %336 = vmatmul.f32.gmra.mxu0 %v165
  %v337 = vpop.f32.mrf.mxu0
  %v338 = vadd.f32 0.0, %v337
  %339 = vmatmul.f32.gmra.mxu0 %v166
  %v340 = vpop.f32.mrf.mxu0
  %v341 = vadd.f32 0.0, %v340
  %342 = vmatmul.f32.gmra.mxu0 %v167
  %v343 = vpop.f32.mrf.mxu0
  %v344 = vadd.f32 0.0, %v343
  %345 = vmatmul.f32.gmra.mxu0 %v168
  %v346 = vpop.f32.mrf.mxu0
  %v347 = vadd.f32 0.0, %v346
  %348 = vdwg.mxu0
  %v349 = vadd.f32 %v71, %v203
  %v350 = vadd.f32 %v72, %v206
  %v351 = vadd.f32 %v73, %v209
  %v352 = vadd.f32 %v74, %v212
  %v353 = vadd.f32 %v75, %v215
  %v354 = vadd.f32 %v76, %v218
  %v355 = vadd.f32 %v77, %v221
  %v356 = vadd.f32 %v78, %v224
  %v357 = vadd.f32 %v79, %v227
  %v358 = vadd.f32 %v80, %v230
  %v359 = vadd.f32 %v81, %v233
  %v360 = vadd.f32 %v82, %v236
  %v361 = vadd.f32 %v83, %v239
  %v362 = vadd.f32 %v84, %v242
  %v363 = vadd.f32 %v85, %v245
  %v364 = vadd.f32 %v86, %v248
  %v365 = vadd.f32 %v87, %v251
  %v366 = vadd.f32 %v88, %v254
  %v367 = vadd.f32 %v89, %v257
  %v368 = vadd.f32 %v90, %v260
  %v369 = vadd.f32 %v91, %v263
  %v370 = vadd.f32 %v92, %v266
  %v371 = vadd.f32 %v93, %v269
  %v372 = vadd.f32 %v94, %v272
  %v373 = vadd.f32 %v95, %v275
  %v374 = vadd.f32 %v96, %v278
  %v375 = vadd.f32 %v97, %v281
  %v376 = vadd.f32 %v98, %v284
  %v377 = vadd.f32 %v99, %v287
  %v378 = vadd.f32 %v100, %v290
  %v379 = vadd.f32 %v101, %v293
  %v380 = vadd.f32 %v102, %v296
  %v381 = vadd.f32 %v103, %v299
  %v382 = vadd.f32 %v104, %v302
  %v383 = vadd.f32 %v105, %v305
  %v384 = vadd.f32 %v106, %v308
  %v385 = vadd.f32 %v107, %v311
  %v386 = vadd.f32 %v108, %v314
  %v387 = vadd.f32 %v109, %v317
  %v388 = vadd.f32 %v110, %v320
  %v389 = vadd.f32 %v111, %v323
  %v390 = vadd.f32 %v112, %v326
  %v391 = vadd.f32 %v113, %v329
  %v392 = vadd.f32 %v114, %v332
  %v393 = vadd.f32 %v115, %v335
  %v394 = vadd.f32 %v116, %v338
  %v395 = vadd.f32 %v117, %v341
  %v396 = vadd.f32 %v118, %v344
  %v397 = vadd.f32 %v119, %v347
  %398 = vst [vmem:[#allocation2] sm:$0xff] %v349
  %399 = vst [vmem:[#allocation2 + $0x8] sm:$0xff] %v350
  %400 = vst [vmem:[#allocation2 + $0x10] sm:$0xff] %v351
  %401 = vst [vmem:[#allocation2 + $0x18] sm:$0xff] %v352
  %402 = vst [vmem:[#allocation2 + $0x20] sm:$0xff] %v353
  %403 = vst [vmem:[#allocation2 + $0x28] sm:$0xff] %v354
  %404 = vst [vmem:[#allocation2 + $0x30] sm:$0xff] %v355
  %405 = vst [vmem:[#allocation2 + $0x38] sm:$0xff] %v356
  %406 = vst [vmem:[#allocation2 + $0x40] sm:$0xff] %v357
  %407 = vst [vmem:[#allocation2 + $0x48] sm:$0xff] %v358
  %408 = vst [vmem:[#allocation2 + $0x50] sm:$0xff] %v359
  %409 = vst [vmem:[#allocation2 + $0x58] sm:$0xff] %v360
  %410 = vst [vmem:[#allocation2 + $0x60] sm:$0xff] %v361
  %411 = vst [vmem:[#allocation2 + $0x68] sm:$0xff] %v362
  %412 = vst [vmem:[#allocation2 + $0x70] sm:$0xff] %v363
  %413 = vst [vmem:[#allocation2 + $0x78] sm:$0xff] %v364
  %414 = vst [vmem:[#allocation2 + $0x80] sm:$0xff] %v365
  %415 = vst [vmem:[#allocation2 + $0x88] sm:$0xff] %v366
  %416 = vst [vmem:[#allocation2 + $0x90] sm:$0xff] %v367
  %417 = vst [vmem:[#allocation2 + $0x98] sm:$0xff] %v368
  %418 = vst [vmem:[#allocation2 + $0xa0] sm:$0xff] %v369
  %419 = vst [vmem:[#allocation2 + $0xa8] sm:$0xff] %v370
  %420 = vst [vmem:[#allocation2 + $0xb0] sm:$0xff] %v371
  %421 = vst [vmem:[#allocation2 + $0xb8] sm:$0xff] %v372
  %422 = vst [vmem:[#allocation2 + $0xc0] sm:$0xff] %v373
  %423 = vst [vmem:[#allocation2 + $0xc8] sm:$0xff] %v374
  %424 = vst [vmem:[#allocation2 + $0xd0] sm:$0xff] %v375
  %425 = vst [vmem:[#allocation2 + $0xd8] sm:$0xff] %v376
  %426 = vst [vmem:[#allocation2 + $0xe0] sm:$0xff] %v377
  %427 = vst [vmem:[#allocation2 + $0xe8] sm:$0xff] %v378
  %428 = vst [vmem:[#allocation2 + $0xf0] sm:$0xff] %v379
  %429 = vst [vmem:[#allocation2 + $0xf8] sm:$0xff] %v380
  %430 = vst [vmem:[#allocation2 + $0x100] sm:$0xff] %v381
  %431 = vst [vmem:[#allocation2 + $0x108] sm:$0xff] %v382
  %432 = vst [vmem:[#allocation2 + $0x110] sm:$0xff] %v383
  %433 = vst [vmem:[#allocation2 + $0x118] sm:$0xff] %v384
  %434 = vst [vmem:[#allocation2 + $0x120] sm:$0xff] %v385
  %435 = vst [vmem:[#allocation2 + $0x128] sm:$0xff] %v386
  %436 = vst [vmem:[#allocation2 + $0x130] sm:$0xff] %v387
  %437 = vst [vmem:[#allocation2 + $0x138] sm:$0xff] %v388
  %438 = vst [vmem:[#allocation2 + $0x140] sm:$0xff] %v389
  %439 = vst [vmem:[#allocation2 + $0x148] sm:$0xff] %v390
  %440 = vst [vmem:[#allocation2 + $0x150] sm:$0xff] %v391
  %441 = vst [vmem:[#allocation2 + $0x158] sm:$0xff] %v392
  %442 = vst [vmem:[#allocation2 + $0x160] sm:$0xff] %v393
  %443 = vst [vmem:[#allocation2 + $0x168] sm:$0xff] %v394
  %444 = vst [vmem:[#allocation2 + $0x170] sm:$0xff] %v395
  %445 = vst [vmem:[#allocation2 + $0x178] sm:$0xff] %v396
  %446 = vst [vmem:[#allocation2 + $0x180] sm:$0xff] %v397
  // Predicated region
  $region18: #{custom_conv_forward.1} parent=0 // pred_check
    %p447 = pneg %p14
  $region19: #{custom_conv_forward.1} parent=0 // pred_check_branch
    %449 = sbr.rel (%p447) target = $region21
  $region20: #{custom_conv_forward.1} parent=0 // pred_region
    %v450 = vld [vmem:[#allocation2] sm:$0xff]
    %v451 = vld [vmem:[#allocation2 + $0x8] sm:$0xff]
    %v452 = vld [vmem:[#allocation2 + $0x10] sm:$0xff]
    %v453 = vld [vmem:[#allocation2 + $0x18] sm:$0xff]
    %v454 = vld [vmem:[#allocation2 + $0x20] sm:$0xff]
    %v455 = vld [vmem:[#allocation2 + $0x28] sm:$0xff]
    %v456 = vld [vmem:[#allocation2 + $0x30] sm:$0xff]
    %v457 = vld [vmem:[#allocation2 + $0x38] sm:$0xff]
    %v458 = vld [vmem:[#allocation2 + $0x40] sm:$0xff]
    %v459 = vld [vmem:[#allocation2 + $0x48] sm:$0xff]
    %v460 = vld [vmem:[#allocation2 + $0x50] sm:$0xff]
    %v461 = vld [vmem:[#allocation2 + $0x58] sm:$0xff]
    %v462 = vld [vmem:[#allocation2 + $0x60] sm:$0xff]
    %v463 = vld [vmem:[#allocation2 + $0x68] sm:$0xff]
    %v464 = vld [vmem:[#allocation2 + $0x70] sm:$0xff]
    %v465 = vld [vmem:[#allocation2 + $0x78] sm:$0xff]
    %v466 = vld [vmem:[#allocation2 + $0x80] sm:$0xff]
    %v467 = vld [vmem:[#allocation2 + $0x88] sm:$0xff]
    %v468 = vld [vmem:[#allocation2 + $0x90] sm:$0xff]
    %v469 = vld [vmem:[#allocation2 + $0x98] sm:$0xff]
    %v470 = vld [vmem:[#allocation2 + $0xa0] sm:$0xff]
    %v471 = vld [vmem:[#allocation2 + $0xa8] sm:$0xff]
    %v472 = vld [vmem:[#allocation2 + $0xb0] sm:$0xff]
    %v473 = vld [vmem:[#allocation2 + $0xb8] sm:$0xff]
    %v474 = vld [vmem:[#allocation2 + $0xc0] sm:$0xff]
    %v475 = vld [vmem:[#allocation2 + $0xc8] sm:$0xff]
    %v476 = vld [vmem:[#allocation2 + $0xd0] sm:$0xff]
    %v477 = vld [vmem:[#allocation2 + $0xd8] sm:$0xff]
    %v478 = vld [vmem:[#allocation2 + $0xe0] sm:$0xff]
    %v479 = vld [vmem:[#allocation2 + $0xe8] sm:$0xff]
    %v480 = vld [vmem:[#allocation2 + $0xf0] sm:$0xff]
    %v481 = vld [vmem:[#allocation2 + $0xf8] sm:$0xff]
    %v482 = vld [vmem:[#allocation2 + $0x100] sm:$0xff]
    %v483 = vld [vmem:[#allocation2 + $0x108] sm:$0xff]
    %v484 = vld [vmem:[#allocation2 + $0x110] sm:$0xff]
    %v485 = vld [vmem:[#allocation2 + $0x118] sm:$0xff]
    %v486 = vld [vmem:[#allocation2 + $0x120] sm:$0xff]
    %v487 = vld [vmem:[#allocation2 + $0x128] sm:$0xff]
    %v488 = vld [vmem:[#allocation2 + $0x130] sm:$0xff]
    %v489 = vld [vmem:[#allocation2 + $0x138] sm:$0xff]
    %v490 = vld [vmem:[#allocation2 + $0x140] sm:$0xff]
    %v491 = vld [vmem:[#allocation2 + $0x148] sm:$0xff]
    %v492 = vld [vmem:[#allocation2 + $0x150] sm:$0xff]
    %v493 = vld [vmem:[#allocation2 + $0x158] sm:$0xff]
    %v494 = vld [vmem:[#allocation2 + $0x160] sm:$0xff]
    %v495 = vld [vmem:[#allocation2 + $0x168] sm:$0xff]
    %v496 = vld [vmem:[#allocation2 + $0x170] sm:$0xff]
    %v497 = vld [vmem:[#allocation2 + $0x178] sm:$0xff]
    %v498 = vld [vmem:[#allocation2 + $0x180] sm:$0xff]
    %v499 = vmax.f32 %v450, 0.0
    %v500 = vmax.f32 %v451, 0.0
    %v501 = vmax.f32 %v452, 0.0
    %v502 = vmax.f32 %v453, 0.0
    %v503 = vmax.f32 %v454, 0.0
    %v504 = vmax.f32 %v455, 0.0
    %v505 = vmax.f32 %v456, 0.0
    %v506 = vmax.f32 %v457, 0.0
    %v507 = vmax.f32 %v458, 0.0
    %v508 = vmax.f32 %v459, 0.0
    %v509 = vmax.f32 %v460, 0.0
    %v510 = vmax.f32 %v461, 0.0
    %v511 = vmax.f32 %v462, 0.0
    %v512 = vmax.f32 %v463, 0.0
    %v513 = vmax.f32 %v464, 0.0
    %v514 = vmax.f32 %v465, 0.0
    %v515 = vmax.f32 %v466, 0.0
    %v516 = vmax.f32 %v467, 0.0
    %v517 = vmax.f32 %v468, 0.0
    %v518 = vmax.f32 %v469, 0.0
    %v519 = vmax.f32 %v470, 0.0
    %v520 = vmax.f32 %v471, 0.0
    %v521 = vmax.f32 %v472, 0.0
    %v522 = vmax.f32 %v473, 0.0
    %v523 = vmax.f32 %v474, 0.0
    %v524 = vmax.f32 %v475, 0.0
    %v525 = vmax.f32 %v476, 0.0
    %v526 = vmax.f32 %v477, 0.0
    %v527 = vmax.f32 %v478, 0.0
    %v528 = vmax.f32 %v479, 0.0
    %v529 = vmax.f32 %v480, 0.0
    %v530 = vmax.f32 %v481, 0.0
    %v531 = vmax.f32 %v482, 0.0
    %v532 = vmax.f32 %v483, 0.0
    %v533 = vmax.f32 %v484, 0.0
    %v534 = vmax.f32 %v485, 0.0
    %v535 = vmax.f32 %v486, 0.0
    %v536 = vmax.f32 %v487, 0.0
    %v537 = vmax.f32 %v488, 0.0
    %v538 = vmax.f32 %v489, 0.0
    %v539 = vmax.f32 %v490, 0.0
    %v540 = vmax.f32 %v491, 0.0
    %v541 = vmax.f32 %v492, 0.0
    %v542 = vmax.f32 %v493, 0.0
    %v543 = vmax.f32 %v494, 0.0
    %v544 = vmax.f32 %v495, 0.0
    %v545 = vmax.f32 %v496, 0.0
    %v546 = vmax.f32 %v497, 0.0
    %v547 = vmax.f32 %v498, 0.0
    %548 = vst [vmem:[%s3] sm:$0xff] %v499
    %549 = vst [vmem:[%s3 + $0x8] sm:$0xff] %v500
    %550 = vst [vmem:[%s3 + $0x10] sm:$0xff] %v501
    %551 = vst [vmem:[%s3 + $0x18] sm:$0xff] %v502
    %552 = vst [vmem:[%s3 + $0x20] sm:$0xff] %v503
    %553 = vst [vmem:[%s3 + $0x28] sm:$0xff] %v504
    %554 = vst [vmem:[%s3 + $0x30] sm:$0xff] %v505
    %555 = vst [vmem:[%s3 + $0x38] sm:$0xff] %v506
    %556 = vst [vmem:[%s3 + $0x40] sm:$0xff] %v507
    %557 = vst [vmem:[%s3 + $0x48] sm:$0xff] %v508
    %558 = vst [vmem:[%s3 + $0x50] sm:$0xff] %v509
    %559 = vst [vmem:[%s3 + $0x58] sm:$0xff] %v510
    %560 = vst [vmem:[%s3 + $0x60] sm:$0xff] %v511
    %561 = vst [vmem:[%s3 + $0x68] sm:$0xff] %v512
    %562 = vst [vmem:[%s3 + $0x70] sm:$0xff] %v513
    %563 = vst [vmem:[%s3 + $0x78] sm:$0xff] %v514
    %564 = vst [vmem:[%s3 + $0x80] sm:$0xff] %v515
    %565 = vst [vmem:[%s3 + $0x88] sm:$0xff] %v516
    %566 = vst [vmem:[%s3 + $0x90] sm:$0xff] %v517
    %567 = vst [vmem:[%s3 + $0x98] sm:$0xff] %v518
    %568 = vst [vmem:[%s3 + $0xa0] sm:$0xff] %v519
    %569 = vst [vmem:[%s3 + $0xa8] sm:$0xff] %v520
    %570 = vst [vmem:[%s3 + $0xb0] sm:$0xff] %v521
    %571 = vst [vmem:[%s3 + $0xb8] sm:$0xff] %v522
    %572 = vst [vmem:[%s3 + $0xc0] sm:$0xff] %v523
    %573 = vst [vmem:[%s3 + $0xc8] sm:$0xff] %v524
    %574 = vst [vmem:[%s3 + $0xd0] sm:$0xff] %v525
    %575 = vst [vmem:[%s3 + $0xd8] sm:$0xff] %v526
    %576 = vst [vmem:[%s3 + $0xe0] sm:$0xff] %v527
    %577 = vst [vmem:[%s3 + $0xe8] sm:$0xff] %v528
    %578 = vst [vmem:[%s3 + $0xf0] sm:$0xff] %v529
    %579 = vst [vmem:[%s3 + $0xf8] sm:$0xff] %v530
    %580 = vst [vmem:[%s3 + $0x100] sm:$0xff] %v531
    %581 = vst [vmem:[%s3 + $0x108] sm:$0xff] %v532
    %582 = vst [vmem:[%s3 + $0x110] sm:$0xff] %v533
    %583 = vst [vmem:[%s3 + $0x118] sm:$0xff] %v534
    %584 = vst [vmem:[%s3 + $0x120] sm:$0xff] %v535
    %585 = vst [vmem:[%s3 + $0x128] sm:$0xff] %v536
    %586 = vst [vmem:[%s3 + $0x130] sm:$0xff] %v537
    %587 = vst [vmem:[%s3 + $0x138] sm:$0xff] %v538
    %588 = vst [vmem:[%s3 + $0x140] sm:$0xff] %v539
    %589 = vst [vmem:[%s3 + $0x148] sm:$0xff] %v540
    %590 = vst [vmem:[%s3 + $0x150] sm:$0xff] %v541
    %591 = vst [vmem:[%s3 + $0x158] sm:$0xff] %v542
    %592 = vst [vmem:[%s3 + $0x160] sm:$0xff] %v543
    %593 = vst [vmem:[%s3 + $0x168] sm:$0xff] %v544
    %594 = vst [vmem:[%s3 + $0x170] sm:$0xff] %v545
    %595 = vst [vmem:[%s3 + $0x178] sm:$0xff] %v546
    %596 = vst [vmem:[%s3 + $0x180] sm:$0xff] %v547
  $region21: #{custom_conv_forward.1} parent=0 // pred_fallthru
    _
  // Predicated region
  $region22: #{custom_conv_forward.1} parent=0 // pred_check
    _
  $region23: #{custom_conv_forward.1} parent=0 // pred_check_branch
    %598 = sbr.rel (0) target = $region25
  $region24: #{custom_conv_forward.1} parent=0 // pred_region
    _
  $region25: #{custom_conv_forward.1} parent=0 // pred_fallthru
    _
  // Predicated region
  $region26: #{custom_conv_forward.1} parent=0 // pred_check
    _
  $region27: #{custom_conv_forward.1} parent=0 // pred_check_branch
    %600 = sbr.rel (0) target = $region29
  $region28: #{custom_conv_forward.1} parent=0 // pred_region
    _
  $region29: #{custom_conv_forward.1} parent=0 // pred_fallthru
    _

</llo_original>
